<compile_context>
chip_gen: v5e
topology: v5e:2x2
jax: 0.10.0
libtpu: 0.0.40
codegen_flags: <defaults>
</compile_context>

<pallas_src>
import jax
import jax.numpy as jnp
from jax import lax
from jax.experimental import pallas as pl
from jax.experimental.pallas import tpu as pltpu

LANE = 128
CHUNK_ROWS = 256  # rows per inner-loop chunk; keeps intermediates in vregs


def _device_kind() -> str:
    try:
        return jax.devices()[0].device_kind.lower()
    except Exception:  # pragma: no cover - defensive
        return ""


_KIND = _device_kind()
_IS_V7 = "v7" in _KIND
# v5e / v6e have a single TensorCore: a core-split grid axis is pure overhead
# there, so only split the reduction on v7x (2 TCs per chip).
NUM_CORES = 2 if _IS_V7 else 1
# ~4 MiB of input tile per pipeline buffer on v7x (3.2 TB/s HBM keeps the
# fixed ~0.35 us per-grid-step overhead under ~15%), ~2 MiB on v5e/v6e.
_TILE_TARGET_BYTES = (4 << 20) if _IS_V7 else (2 << 20)


def _make_kernel(tiles_per_core, num_full_tiles, ragged, valid_ragged_rows,
                 chunk, n_chunks, fold, exact):
    """Builds the reduction kernel; all tiling parameters are static."""
    acc_rows = 8 if fold else chunk

    def chunk_partial(o, t, row0=None):
        # Squared-diff partial of one (chunk, LANE) slice, folded along the
        # sublane-tile axis to (acc_rows, LANE).  If row0 is not None we are
        # in the ragged tile: rows at local index >= valid_ragged_rows are
        # zeroed (their DMA'd contents are padding/garbage).
        d = o.astype(jnp.float32) - t.astype(jnp.float32)
        dsq = d * d
        if row0 is not None:
            local = row0 + lax.broadcasted_iota(jnp.int32, dsq.shape, 0)
            dsq = jnp.where(local < valid_ragged_rows, dsq, 0.0)
        if fold:
            return dsq.reshape(chunk // 8, 8, LANE).sum(axis=0)
        return dsq

    def tile_partial(o_ref, t_ref, masked):
        if n_chunks == 1:
            return chunk_partial(o_ref[...], t_ref[...],
                                 row0=0 if masked else None)

        def body(j, carry):
            r = pl.multiple_of(j * chunk, chunk)
            o = o_ref[pl.ds(r, chunk), :]
            t = t_ref[pl.ds(r, chunk), :]
            return carry + chunk_partial(o, t,
                                         row0=(j * chunk) if masked else None)

        return lax.fori_loop(0, n_chunks, body,
                             jnp.zeros((acc_rows, LANE), jnp.float32))

    def kernel(o_ref, t_ref, out_ref, acc_ref):
        c = pl.program_id(0)  # core-split axis
        i = pl.program_id(1)  # sequential reduction axis
        tile_idx = c * tiles_per_core + i

        @pl.when(i == 0)
        def _init():
            acc_ref[...] = jnp.zeros_like(acc_ref)

        if exact:
            # No ragged tail and no phantom tiles: every step is unmasked.
            acc_ref[...] += tile_partial(o_ref, t_ref, masked=False)
        else:
            # Steady-state full tiles: no masking at all.
            @pl.when(tile_idx < num_full_tiles)
            def _full():
                acc_ref[...] += tile_partial(o_ref, t_ref, masked=False)

            if ragged:
                # Single ragged last tile pays the iota/compare/select.
                @pl.when(tile_idx == num_full_tiles)
                def _ragged_tile():
                    acc_ref[...] += tile_partial(o_ref, t_ref, masked=True)
            # tile_idx beyond the last real tile (phantom tiles of the core
            # split) is skipped entirely; its clamped DMA re-reads the last
            # tile but contributes nothing.

        @pl.when(i == pl.num_programs(1) - 1)
        def _finalize():
            out_ref[0, 0] = jnp.sum(acc_ref[...])

    return kernel, acc_rows


def _reduce_sum_sq_diff(o2d, t2d):
    """Sum of squared differences over a (rows, LANE) pair via a Pallas kernel."""
    rows = o2d.shape[0]
    itemsize = max(o2d.dtype.itemsize, t2d.dtype.itemsize)

    row_tile_target = (_TILE_TARGET_BYTES // (LANE * itemsize))
    row_tile_target = max((row_tile_target // CHUNK_ROWS) * CHUNK_ROWS, CHUNK_ROWS)
    row_tile = rows if rows <= row_tile_target else row_tile_target

    num_row_tiles = pl.cdiv(rows, row_tile)
    num_full_tiles = rows // row_tile
    ragged = num_full_tiles * row_tile != rows
    valid_ragged_rows = rows - num_full_tiles * row_tile
    tiles_per_core = pl.cdiv(num_row_tiles, NUM_CORES)
    has_phantom = tiles_per_core * NUM_CORES != num_row_tiles
    exact = (not ragged) and (not has_phantom)
    # Defensive: a phantom tile must never take the unguarded 'exact' path.
    assert not (exact and has_phantom)

    if row_tile % CHUNK_ROWS == 0 and row_tile > CHUNK_ROWS:
        chunk, n_chunks = CHUNK_ROWS, row_tile // CHUNK_ROWS
    else:
        chunk, n_chunks = row_tile, 1
    fold = chunk % 8 == 0

    kernel, acc_rows = _make_kernel(tiles_per_core, num_full_tiles, ragged,
                                    valid_ragged_rows, chunk, n_chunks, fold,
                                    exact)

    def in_index_map(c, i):
        # Clamp so the auto-DMA always stays in bounds; phantom tiles re-read
        # the last real tile and are skipped by the in-kernel gating.
        return (jnp.minimum(c * tiles_per_core + i, num_row_tiles - 1), 0)

    tile_bytes = row_tile * LANE * itemsize
    # 2 inputs x 2 pipeline buffers + slack; explicit limit so the large tiles
    # compile on v5e's 16 MiB default scoped VMEM as well as v6e/v7x.
    vmem_limit = min(40 << 20, max(16 << 20, 4 * tile_bytes + (8 << 20)))

    def run(dim_sem):
        return pl.pallas_call(
            kernel,
            out_shape=jax.ShapeDtypeStruct((NUM_CORES, 1), jnp.float32),
            grid_spec=pltpu.PrefetchScalarGridSpec(
                num_scalar_prefetch=0,
                grid=(NUM_CORES, tiles_per_core),
                in_specs=[
                    pl.BlockSpec((row_tile, LANE), in_index_map),
                    pl.BlockSpec((row_tile, LANE), in_index_map),
                ],
                out_specs=pl.BlockSpec((1, 1), lambda c, i: (c, 0),
                                       memory_space=pltpu.SMEM),
                scratch_shapes=[pltpu.VMEM((acc_rows, LANE), jnp.float32)],
            ),
            compiler_params=pltpu.CompilerParams(
                dimension_semantics=dim_sem,
                vmem_limit_bytes=vmem_limit),
        )(o2d, t2d)

    if NUM_CORES > 1:
        # On v7x request core-level sharding so both TensorCores stream HBM.
        preferred = (getattr(pltpu, "CORE_PARALLEL", "parallel"),
                     getattr(pltpu, "ARBITRARY", "arbitrary"))
    else:
        preferred = ("arbitrary", "arbitrary")

    try:
        partials = run(preferred)
    except Exception:  # conservative fallback if core-parallel is rejected
        partials = run(("arbitrary", "arbitrary"))
    return jnp.sum(partials)


def pallas_loss(output, target):
    """MSE-style custom loss computed by a Pallas TPU reduction kernel.

    `output`, `target`: arrays of identical shape (f32 or bf16, consumed in
    their native dtype; the f32 upcast happens inside the kernel).
    Returns a scalar f32.
    """
    assert output.shape == target.shape, "output/target shape mismatch"
    total_n = output.size
    assert total_n > 0, "empty inputs"

    flat_o = output.reshape(-1)  # reshape of contiguous data is free
    flat_t = target.reshape(-1)
    rows = total_n // LANE
    rem = total_n - rows * LANE

    total = jnp.float32(0.0)
    if rows > 0:
        if rem:
            # TODO(synk): this prefix slice can still materialize a copy in
            # eager mode; it is only hit when numel % 128 != 0.
            o_main = lax.slice(flat_o, (0,), (rows * LANE,))
            t_main = lax.slice(flat_t, (0,), (rows * LANE,))
        else:
            o_main, t_main = flat_o, flat_t
        total = total + _reduce_sum_sq_diff(o_main.reshape(rows, LANE),
                                            t_main.reshape(rows, LANE))
    if rem:
        # Sub-128-element tail: trivial jnp reduction instead of padding both
        # full operands.
        o_tail = lax.slice(flat_o, (rows * LANE,), (total_n,)).astype(jnp.float32)
        t_tail = lax.slice(flat_t, (rows * LANE,), (total_n,)).astype(jnp.float32)
        total = total + jnp.sum((o_tail - t_tail) ** 2)

    return total * jnp.float32(1.0 / total_n)


if __name__ == "__main__":
    key = jax.random.PRNGKey(0)
    k1, k2, k3, k4, k5, k6, k7, k8 = jax.random.split(key, 8)

    # (1) Small NCHW f32 pair, lane-aligned element count (2048 elems).
    B, C, H, W = 2, 4, 16, 16
    out_f32 = jax.random.normal(k1, (B, C, H, W), dtype=jnp.float32)
    tgt_f32 = jax.random.normal(k2, (B, C, H, W), dtype=jnp.float32)
    loss_f32 = pallas_loss(out_f32, tgt_f32)
    jax.block_until_ready(loss_f32)
    ref_f32 = jnp.mean((out_f32 - tgt_f32) ** 2)
    assert jnp.allclose(loss_f32, ref_f32, rtol=1e-6, atol=1e-6), (loss_f32, ref_f32)

    # (2) bf16 inputs consumed natively (cast to f32 inside the kernel).
    out_bf = jax.random.normal(k3, (B, C, H, W), dtype=jnp.bfloat16)
    tgt_bf = jax.random.normal(k4, (B, C, H, W), dtype=jnp.bfloat16)
    loss_bf = pallas_loss(out_bf, tgt_bf)
    jax.block_until_ready(loss_bf)
    ref_bf = jnp.mean(
        (out_bf.astype(jnp.float32) - tgt_bf.astype(jnp.float32)) ** 2)
    assert jnp.allclose(loss_bf, ref_bf, rtol=1e-5, atol=1e-5), (loss_bf, ref_bf)

    # (3) Unaligned element count (105) exercises the lane-remainder tail path.
    out_odd = jax.random.normal(k5, (3, 5, 7), dtype=jnp.float32)
    tgt_odd = jax.random.normal(k6, (3, 5, 7), dtype=jnp.float32)
    loss_odd = pallas_loss(out_odd, tgt_odd)
    jax.block_until_ready(loss_odd)
    ref_odd = jnp.mean((out_odd - tgt_odd) ** 2)
    assert jnp.allclose(loss_odd, ref_odd, rtol=1e-6, atol=1e-6), (loss_odd, ref_odd)

    # (4) Multi-tile input (8240 rows of 128): exercises the inner chunk loop,
    #     the gated ragged-tile mask and the per-core combine.
    out_big = jax.random.normal(k7, (2, 4, 128, 1030), dtype=jnp.float32)
    tgt_big = jax.random.normal(k8, (2, 4, 128, 1030), dtype=jnp.float32)
    loss_big = pallas_loss(out_big, tgt_big)
    jax.block_until_ready(loss_big)
    ref_big = jnp.mean((out_big - tgt_big) ** 2)
    assert jnp.allclose(loss_big, ref_big, rtol=1e-4, atol=1e-6), (loss_big, ref_big)

    print("KERNEL_OK")
</pallas_src>

<mosaic_0001>
module attributes {stable_mosaic.version = 11 : i64} {
  func.func @kernel(%arg0: i32, %arg1: i32, %arg2: memref<16x128xf32, #tpu.memory_space<vmem>>, %arg3: memref<16x128xf32, #tpu.memory_space<vmem>>, %arg4: memref<1x1xf32, #tpu.memory_space<smem>>, %arg5: memref<8x128xf32, #tpu.memory_space<vmem>>) attributes {dimension_semantics = [#tpu.dimension_semantics<arbitrary>, #tpu.dimension_semantics<arbitrary>], iteration_bounds = array<i64: 1, 1>, scalar_prefetch = 0 : i64, scratch_operands = 1 : i64, tpu.core_type = #tpu.core_type<tc>, window_params = [{transform_indices = @transform_0, window_bounds = array<i64: 16, 128>}, {transform_indices = @transform_1, window_bounds = array<i64: 16, 128>}, {transform_indices = @transform_2, window_bounds = array<i64: 1, 1>}]} {
    %c0_i32 = arith.constant 0 : i32
    %0 = arith.cmpi eq, %arg1, %c0_i32 : i32
    %1 = arith.extui %0 : i1 to i32
    %c0_i32_0 = arith.constant 0 : i32
    %2 = arith.cmpi ne, %1, %c0_i32_0 : i32
    scf.if %2 {
      %cst_10 = arith.constant 0.000000e+00 : f32
      %15 = vector.broadcast %cst_10 : f32 to vector<8x128xf32>
      %c0_11 = arith.constant 0 : index
      %c0_12 = arith.constant 0 : index
      %16 = vector.load %arg5[%c0_11, %c0_12] : memref<8x128xf32, #tpu.memory_space<vmem>>, vector<8x128xf32>
      tpu.vector_store %arg5[%c0_11, %c0_12], %15 {strides = array<i32>} : memref<8x128xf32, #tpu.memory_space<vmem>>, vector<8x128xf32>,
    } else {
    }
    %c0 = arith.constant 0 : index
    %c0_1 = arith.constant 0 : index
    %3 = vector.load %arg5[%c0, %c0_1] : memref<8x128xf32, #tpu.memory_space<vmem>>, vector<8x128xf32>
    %c0_2 = arith.constant 0 : index
    %c0_3 = arith.constant 0 : index
    %4 = vector.load %arg2[%c0_2, %c0_3] : memref<16x128xf32, #tpu.memory_space<vmem>>, vector<16x128xf32>
    %c0_4 = arith.constant 0 : index
    %c0_5 = arith.constant 0 : index
    %5 = vector.load %arg3[%c0_4, %c0_5] : memref<16x128xf32, #tpu.memory_space<vmem>>, vector<16x128xf32>
    %6 = arith.subf %4, %5 : vector<16x128xf32>
    %7 = arith.mulf %6, %6 : vector<16x128xf32>
    %8 = vector.shape_cast %7 : vector<16x128xf32> to vector<2x8x128xf32>
    %cst = arith.constant dense<0.000000e+00> : vector<8x128xf32>
    %9 = vector.multi_reduction <add>, %8, %cst [0] : vector<2x8x128xf32> to vector<8x128xf32>
    %10 = arith.addf %3, %9 : vector<8x128xf32>
    %c0_6 = arith.constant 0 : index
    %c0_7 = arith.constant 0 : index
    %11 = vector.load %arg5[%c0_6, %c0_7] : memref<8x128xf32, #tpu.memory_space<vmem>>, vector<8x128xf32>
    tpu.vector_store %arg5[%c0_6, %c0_7], %10 {strides = array<i32>} : memref<8x128xf32, #tpu.memory_space<vmem>>, vector<8x128xf32>,
    %c0_i32_8 = arith.constant 0 : i32
    %12 = arith.cmpi eq, %arg1, %c0_i32_8 : i32
    %13 = arith.extui %12 : i1 to i32
    %c0_i32_9 = arith.constant 0 : i32
    %14 = arith.cmpi ne, %13, %c0_i32_9 : i32
    scf.if %14 {
      %c0_10 = arith.constant 0 : index
      %c0_11 = arith.constant 0 : index
      %15 = vector.load %arg5[%c0_10, %c0_11] : memref<8x128xf32, #tpu.memory_space<vmem>>, vector<8x128xf32>
      %16 = vector.shape_cast %15 : vector<8x128xf32> to vector<1x8x128xf32>
      %cst_12 = arith.constant dense<0.000000e+00> : vector<1xf32>
      %17 = vector.multi_reduction <add>, %16, %cst_12 [1, 2] : vector<1x8x128xf32> to vector<1xf32>
      %18 = vector.shape_cast %17 : vector<1xf32> to vector<1x1x1xf32>
      %19 = vector.extract %18[0, 0, 0] : f32 from vector<1x1x1xf32>
      %c0_13 = arith.constant 0 : index
      %c0_14 = arith.constant 0 : index
      %20 = memref.load %arg4[%c0_13, %c0_14] : memref<1x1xf32, #tpu.memory_space<smem>>
      memref.store %19, %arg4[%c0_13, %c0_14] : memref<1x1xf32, #tpu.memory_space<smem>>
    } else {
    }
    return
  }
  func.func @transform_0(%arg0: i32, %arg1: i32) -> (i32, i32) {
    %c1_i32 = arith.constant 1 : i32
    %0 = arith.muli %arg0, %c1_i32 : i32
    %1 = arith.addi %0, %arg1 : i32
    %c0_i32 = arith.constant 0 : i32
    %2 = arith.minsi %1, %c0_i32 : i32
    %c0_i32_0 = arith.constant 0 : i32
    %c0_i32_1 = arith.constant 0 : i32
    return %2, %c0_i32_0 : i32, i32
  }
  func.func @transform_1(%arg0: i32, %arg1: i32) -> (i32, i32) {
    %c1_i32 = arith.constant 1 : i32
    %0 = arith.muli %arg0, %c1_i32 : i32
    %1 = arith.addi %0, %arg1 : i32
    %c0_i32 = arith.constant 0 : i32
    %2 = arith.minsi %1, %c0_i32 : i32
    %c0_i32_0 = arith.constant 0 : i32
    %c0_i32_1 = arith.constant 0 : i32
    return %2, %c0_i32_0 : i32, i32
  }
  func.func @transform_2(%arg0: i32, %arg1: i32) -> (i32, i32) {
    %c0_i32 = arith.constant 0 : i32
    %c0_i32_0 = arith.constant 0 : i32
    return %arg0, %c0_i32 : i32, i32
  }
}

module attributes {stable_mosaic.version = 11 : i64} {
  func.func @kernel(%arg0: i32, %arg1: i32, %arg2: memref<16x128xf32, #tpu.memory_space<vmem>>, %arg3: memref<16x128xf32, #tpu.memory_space<vmem>>, %arg4: memref<1x1xf32, #tpu.memory_space<smem>>, %arg5: memref<8x128xf32, #tpu.memory_space<vmem>>) attributes {dimension_semantics = [#tpu.dimension_semantics<arbitrary>, #tpu.dimension_semantics<arbitrary>], iteration_bounds = array<i64: 1, 1>, scalar_prefetch = 0 : i64, scratch_operands = 1 : i64, tpu.core_type = #tpu.core_type<tc>, window_params = [{transform_indices = @transform_0, window_bounds = array<i64: 16, 128>}, {transform_indices = @transform_1, window_bounds = array<i64: 16, 128>}, {transform_indices = @transform_2, window_bounds = array<i64: 1, 1>}]} {
    %c0_i32 = arith.constant 0 : i32
    %0 = arith.cmpi eq, %arg1, %c0_i32 : i32
    %1 = arith.extui %0 : i1 to i32
    %c0_i32_0 = arith.constant 0 : i32
    %2 = arith.cmpi ne, %1, %c0_i32_0 : i32
    scf.if %2 {
      %cst_10 = arith.constant 0.000000e+00 : f32
      %15 = vector.broadcast %cst_10 : f32 to vector<8x128xf32>
      %c0_11 = arith.constant 0 : index
      %c0_12 = arith.constant 0 : index
      %16 = vector.load %arg5[%c0_11, %c0_12] : memref<8x128xf32, #tpu.memory_space<vmem>>, vector<8x128xf32>
      tpu.vector_store %arg5[%c0_11, %c0_12], %15 {strides = array<i32>} : memref<8x128xf32, #tpu.memory_space<vmem>>, vector<8x128xf32>,
    } else {
    }
    %c0 = arith.constant 0 : index
    %c0_1 = arith.constant 0 : index
    %3 = vector.load %arg5[%c0, %c0_1] : memref<8x128xf32, #tpu.memory_space<vmem>>, vector<8x128xf32>
    %c0_2 = arith.constant 0 : index
    %c0_3 = arith.constant 0 : index
    %4 = vector.load %arg2[%c0_2, %c0_3] : memref<16x128xf32, #tpu.memory_space<vmem>>, vector<16x128xf32>
    %c0_4 = arith.constant 0 : index
    %c0_5 = arith.constant 0 : index
    %5 = vector.load %arg3[%c0_4, %c0_5] : memref<16x128xf32, #tpu.memory_space<vmem>>, vector<16x128xf32>
    %6 = arith.subf %4, %5 : vector<16x128xf32>
    %7 = arith.mulf %6, %6 : vector<16x128xf32>
    %8 = vector.shape_cast %7 : vector<16x128xf32> to vector<2x8x128xf32>
    %cst = arith.constant dense<0.000000e+00> : vector<8x128xf32>
    %9 = vector.multi_reduction <add>, %8, %cst [0] : vector<2x8x128xf32> to vector<8x128xf32>
    %10 = arith.addf %3, %9 : vector<8x128xf32>
    %c0_6 = arith.constant 0 : index
    %c0_7 = arith.constant 0 : index
    %11 = vector.load %arg5[%c0_6, %c0_7] : memref<8x128xf32, #tpu.memory_space<vmem>>, vector<8x128xf32>
    tpu.vector_store %arg5[%c0_6, %c0_7], %10 {strides = array<i32>} : memref<8x128xf32, #tpu.memory_space<vmem>>, vector<8x128xf32>,
    %c0_i32_8 = arith.constant 0 : i32
    %12 = arith.cmpi eq, %arg1, %c0_i32_8 : i32
    %13 = arith.extui %12 : i1 to i32
    %c0_i32_9 = arith.constant 0 : i32
    %14 = arith.cmpi ne, %13, %c0_i32_9 : i32
    scf.if %14 {
      %c0_10 = arith.constant 0 : index
      %c0_11 = arith.constant 0 : index
      %15 = vector.load %arg5[%c0_10, %c0_11] : memref<8x128xf32, #tpu.memory_space<vmem>>, vector<8x128xf32>
      %16 = vector.shape_cast %15 : vector<8x128xf32> to vector<1x8x128xf32>
      %cst_12 = arith.constant dense<0.000000e+00> : vector<1xf32>
      %17 = vector.multi_reduction <add>, %16, %cst_12 [1, 2] : vector<1x8x128xf32> to vector<1xf32>
      %18 = vector.shape_cast %17 : vector<1xf32> to vector<1x1x1xf32>
      %19 = vector.extract %18[0, 0, 0] : f32 from vector<1x1x1xf32>
      %c0_13 = arith.constant 0 : index
      %c0_14 = arith.constant 0 : index
      %20 = memref.load %arg4[%c0_13, %c0_14] : memref<1x1xf32, #tpu.memory_space<smem>>
      memref.store %19, %arg4[%c0_13, %c0_14] : memref<1x1xf32, #tpu.memory_space<smem>>
    } else {
    }
    return
  }
  func.func @transform_0(%arg0: i32, %arg1: i32) -> (i32, i32) {
    %c1_i32 = arith.constant 1 : i32
    %0 = arith.muli %arg0, %c1_i32 : i32
    %1 = arith.addi %0, %arg1 : i32
    %c0_i32 = arith.constant 0 : i32
    %2 = arith.minsi %1, %c0_i32 : i32
    %c0_i32_0 = arith.constant 0 : i32
    %c0_i32_1 = arith.constant 0 : i32
    return %2, %c0_i32_0 : i32, i32
  }
  func.func @transform_1(%arg0: i32, %arg1: i32) -> (i32, i32) {
    %c1_i32 = arith.constant 1 : i32
    %0 = arith.muli %arg0, %c1_i32 : i32
    %1 = arith.addi %0, %arg1 : i32
    %c0_i32 = arith.constant 0 : i32
    %2 = arith.minsi %1, %c0_i32 : i32
    %c0_i32_0 = arith.constant 0 : i32
    %c0_i32_1 = arith.constant 0 : i32
    return %2, %c0_i32_0 : i32, i32
  }
  func.func @transform_2(%arg0: i32, %arg1: i32) -> (i32, i32) {
    %c0_i32 = arith.constant 0 : i32
    %c0_i32_0 = arith.constant 0 : i32
    return %arg0, %c0_i32 : i32, i32
  }
}

</mosaic_0001>

<llo_original>
// kernel: tpu_custom_call.1
$region0: #{tpu_custom_call.1}
  #allocation0 [shape = 'u32[]', space=smem, size = 0x4, offset = 0x4, fixed_abs, tag = 'smem constant byte address 0x4 - core index']
  #allocation1 [shape = 'u32[72,128]{1,0:T(1,128)}', space=vmem, size = 0x9000, scoped, tag = 'internal scratch']
  #allocation2 [shape = 'f32[8,128]{1,0:T(8,128)}', space=vmem, size = 0x1000, scoped, tag = 'scratch operand']
  %s0 = inlined_call_operand.hbm [shape: f32[16,128], index: 0, kind: input, shape index: {}]
  %s1 = inlined_call_operand.hbm [shape: f32[16,128], index: 1, kind: input, shape index: {}]
  %s2 = inlined_call_operand.hbm [shape: f32[1,1], index: 2, kind: output, shape index: {}]
  %s3 = sld [smem:[#allocation0]]
  $region34: #{tpu_custom_call.1} parent=0
    _
  %s5 = ssub.s32 1, %s3
  %s6 = scalar_select 0, %s5, %s3
  $region1: #{tpu_custom_call.1} parent=0
    #allocation3 [shape = 'u8[8192]{0}', space=vmem, size = 0x2000, scoped, tag = 'input window, operand 0, single buffered']
    #allocation4 [shape = 's32[1]{0}', space=sflag, size = 0x4, scoped, tag = 'scoped memory for tpu_custom_call.1']
    #allocation5 [shape = 's32[1]{0}', space=sflag, size = 0x4, scoped, tag = 'scoped memory for tpu_custom_call.1']
    #allocation6 [shape = 'u8[8192]{0}', space=vmem, size = 0x2000, scoped, tag = 'input window, operand 1, single buffered']
    #allocation7 [shape = 's32[1]{0}', space=sflag, size = 0x4, scoped, tag = 'scoped memory for tpu_custom_call.1']
    #allocation8 [shape = 'u8[512]{0}', space=smem, size = 0x200, scoped, tag = 'output window, operand 0, single buffered']
    %7 = vsyncpa [#allocation4], 0
    %8 = vsyncpa [#allocation7], 0
    %9 = vsyncpa [#allocation5], 0
    // Predicated region
    $region2: #{tpu_custom_call.1} parent=1 // pred_check
      _
    $region3: #{tpu_custom_call.1} parent=1 // pred_check_branch
      %11 = sbr.rel (0) target = $region5
    $region4: #{tpu_custom_call.1} parent=1 // pred_region
      %s12 = sadd.s32 0, 0
      %p13 = scmp.lt.s32.totalorder %s12, 0
      %s14 = scalar_select %p13, %s12, 0
      %s15 = smul.u32 2, %s14
      %17 = vsyncadd [#allocation4], 0
      %s18 = smul.addr %s15, 8
      %s19 = scalar_lea.hbm %s0, %s18
      %s20 = sshll.u32 %s19, 4
      %s21 = int_to_ptr.hbm [resolvable:$true] %s20
      %s22 = sshll.u32 [#allocation3], 4
      %s23 = int_to_ptr.vmem [resolvable:$true] %s22
      %28 = dma.hbm_to_vmem [thread:$0]  %s21, 256, %s23, [#allocation4], 128, 128, 8
    $region5: #{tpu_custom_call.1} parent=1 // pred_fallthru
      _
    // Predicated region
    $region6: #{tpu_custom_call.1} parent=1 // pred_check
      _
    $region7: #{tpu_custom_call.1} parent=1 // pred_check_branch
      %30 = sbr.rel (0) target = $region9
    $region8: #{tpu_custom_call.1} parent=1 // pred_region
      %s31 = sadd.s32 0, 0
      %p32 = scmp.lt.s32.totalorder %s31, 0
      %s33 = scalar_select %p32, %s31, 0
      %s34 = smul.u32 2, %s33
      %36 = vsyncadd [#allocation7], 0
      %s37 = smul.addr %s34, 8
      %s38 = scalar_lea.hbm %s1, %s37
      %s39 = sshll.u32 %s38, 4
      %s40 = int_to_ptr.hbm [resolvable:$true] %s39
      %s41 = sshll.u32 [#allocation6], 4
      %s42 = int_to_ptr.vmem [resolvable:$true] %s41
      %47 = dma.hbm_to_vmem [thread:$0]  %s40, 256, %s42, [#allocation7], 128, 128, 8
    $region9: #{tpu_custom_call.1} parent=1 // pred_fallthru
      _
    // Predicated region
    $region10: #{tpu_custom_call.1} parent=1 // pred_check
      _
    $region11: #{tpu_custom_call.1} parent=1 // pred_check_branch
      %49 = sbr.rel (0) target = $region13
    $region12: #{tpu_custom_call.1} parent=1 // pred_region
      %51 = dma.done [#allocation4], 256
    $region13: #{tpu_custom_call.1} parent=1 // pred_fallthru
      _
    // Predicated region
    $region14: #{tpu_custom_call.1} parent=1 // pred_check
      _
    $region15: #{tpu_custom_call.1} parent=1 // pred_check_branch
      %53 = sbr.rel (0) target = $region17
    $region16: #{tpu_custom_call.1} parent=1 // pred_region
      %55 = dma.done [#allocation7], 256
    $region17: #{tpu_custom_call.1} parent=1 // pred_fallthru
      _
    %s56 = sadd.s32 0, 0
    %p57 = scmp.lt.s32.totalorder %s56, 0
    %s58 = scalar_select %p57, %s56, 0
    %s59 = smul.u32 2, %s58
    %s60 = sadd.s32 0, 0
    %p61 = scmp.lt.s32.totalorder %s60, 0
    %s62 = scalar_select %p61, %s60, 0
    %s63 = smul.u32 2, %s62
    %p64 = scmp.eq.s32.totalorder 0, 0
    // Predicated region
    $region18: #{tpu_custom_call.1} parent=1 // pred_check
      %p65 = pneg %p64
    $region19: #{tpu_custom_call.1} parent=1 // pred_check_branch
      %67 = sbr.rel (%p65) target = $region21
    $region20: #{tpu_custom_call.1} parent=1 // pred_region
      %68 = vst [vmem:[#allocation2] sm:$0xff] 0.0
    $region21: #{tpu_custom_call.1} parent=1 // pred_fallthru
      _
    %v69 = vld [vmem:[#allocation2] sm:$0xff]
    %v70 = vld [vmem:[#allocation3] sm:$0xff]
    %v71 = vld [vmem:[#allocation3 + $0x8] sm:$0xff]
    %v72 = vld [vmem:[#allocation6] sm:$0xff]
    %v73 = vld [vmem:[#allocation6 + $0x8] sm:$0xff]
    %v74 = vsub.f32 %v70, %v72
    %v75 = vsub.f32 %v71, %v73
    %v76 = vmul.f32 %v74, %v74
    %v77 = vmul.f32 %v75, %v75
    %v78 = vadd.f32 %v76, %v77
    %v79 = vadd.f32 %v69, %v78
    %80 = vst [vmem:[#allocation2] sm:$0xff] %v79
    // Predicated region
    $region22: #{tpu_custom_call.1} parent=1 // pred_check
      %p81 = pneg %p64
    $region23: #{tpu_custom_call.1} parent=1 // pred_check_branch
      %83 = sbr.rel (%p81) target = $region25
    $region24: #{tpu_custom_call.1} parent=1 // pred_region
      %v84 = vld [vmem:[#allocation2] sm:$0xff]
      %85 = vadd.xlane.f32.xlu0 %v84
      %v86 = vpop.xlane.xlu0 %85
      %v87 = vrot.slane %v86, 4
      %v88 = vadd.f32 %v86, %v87
      %v89 = vrot.slane %v88, 2
      %v90 = vadd.f32 %v88, %v89
      %v91 = vrot.slane %v90, 1
      %v92 = vadd.f32 %v90, %v91
      %s93 = vtos %v92
      %s94 = scalar_lea.smem [#allocation8], 0
      %95 = sst [smem:[%s94]] %s93
    $region25: #{tpu_custom_call.1} parent=1 // pred_fallthru
      _
    // Predicated region
    $region26: #{tpu_custom_call.1} parent=1 // pred_check
      _
    $region27: #{tpu_custom_call.1} parent=1 // pred_check_branch
      %97 = sbr.rel (0) target = $region29
    $region28: #{tpu_custom_call.1} parent=1 // pred_region
      %99 = vsyncadd [#allocation5], 0
      %s101 = sshll.u32 %s2, 4
      %s102 = int_to_ptr.hbm [resolvable:$true] %s101
      %104 = dma.smem_to_hbm [#allocation8], 16, %s102, [#allocation5]
    $region29: #{tpu_custom_call.1} parent=1 // pred_fallthru
      _
    // Predicated region
    $region30: #{tpu_custom_call.1} parent=1 // pred_check
      _
    $region31: #{tpu_custom_call.1} parent=1 // pred_check_branch
      %106 = sbr.rel (0) target = $region33
    $region32: #{tpu_custom_call.1} parent=1 // pred_region
      %108 = dma.done [#allocation5], 16
    $region33: #{tpu_custom_call.1} parent=1 // pred_fallthru
      _
    %109 = sfence
    %110 = vsyncpa [#allocation4], 1
    %111 = vsyncpa [#allocation7], 1
    %112 = vsyncpa [#allocation5], 1

// kernel: tpu_custom_call.1
$region0: #{tpu_custom_call.1}
  #allocation0 [shape = 'u32[]', space=smem, size = 0x4, offset = 0x4, fixed_abs, tag = 'smem constant byte address 0x4 - core index']
  #allocation1 [shape = 'u32[72,128]{1,0:T(1,128)}', space=vmem, size = 0x9000, scoped, tag = 'internal scratch']
  #allocation2 [shape = 'f32[8,128]{1,0:T(8,128)}', space=vmem, size = 0x1000, scoped, tag = 'scratch operand']
  %s0 = inlined_call_operand.hbm [shape: f32[16,128], index: 0, kind: input, shape index: {}]
  %s1 = inlined_call_operand.hbm [shape: f32[16,128], index: 1, kind: input, shape index: {}]
  %s2 = inlined_call_operand.hbm [shape: f32[1,1], index: 2, kind: output, shape index: {}]
  %s3 = sld [smem:[#allocation0]]
  $region34: #{tpu_custom_call.1} parent=0
    _
  %s5 = ssub.s32 1, %s3
  %s6 = scalar_select 0, %s5, %s3
  $region1: #{tpu_custom_call.1} parent=0
    #allocation3 [shape = 'u8[8192]{0}', space=vmem, size = 0x2000, scoped, tag = 'input window, operand 0, single buffered']
    #allocation4 [shape = 's32[1]{0}', space=sflag, size = 0x4, scoped, tag = 'scoped memory for tpu_custom_call.1']
    #allocation5 [shape = 's32[1]{0}', space=sflag, size = 0x4, scoped, tag = 'scoped memory for tpu_custom_call.1']
    #allocation6 [shape = 'u8[8192]{0}', space=vmem, size = 0x2000, scoped, tag = 'input window, operand 1, single buffered']
    #allocation7 [shape = 's32[1]{0}', space=sflag, size = 0x4, scoped, tag = 'scoped memory for tpu_custom_call.1']
    #allocation8 [shape = 'u8[512]{0}', space=smem, size = 0x200, scoped, tag = 'output window, operand 0, single buffered']
    %7 = vsyncpa [#allocation4], 0
    %8 = vsyncpa [#allocation7], 0
    %9 = vsyncpa [#allocation5], 0
    // Predicated region
    $region2: #{tpu_custom_call.1} parent=1 // pred_check
      _
    $region3: #{tpu_custom_call.1} parent=1 // pred_check_branch
      %11 = sbr.rel (0) target = $region5
    $region4: #{tpu_custom_call.1} parent=1 // pred_region
      %s12 = sadd.s32 0, 0
      %p13 = scmp.lt.s32.totalorder %s12, 0
      %s14 = scalar_select %p13, %s12, 0
      %s15 = smul.u32 2, %s14
      %17 = vsyncadd [#allocation4], 0
      %s18 = smul.addr %s15, 8
      %s19 = scalar_lea.hbm %s0, %s18
      %s20 = sshll.u32 %s19, 4
      %s21 = int_to_ptr.hbm [resolvable:$true] %s20
      %s22 = sshll.u32 [#allocation3], 4
      %s23 = int_to_ptr.vmem [resolvable:$true] %s22
      %28 = dma.hbm_to_vmem [thread:$0]  %s21, 256, %s23, [#allocation4], 128, 128, 8
    $region5: #{tpu_custom_call.1} parent=1 // pred_fallthru
      _
    // Predicated region
    $region6: #{tpu_custom_call.1} parent=1 // pred_check
      _
    $region7: #{tpu_custom_call.1} parent=1 // pred_check_branch
      %30 = sbr.rel (0) target = $region9
    $region8: #{tpu_custom_call.1} parent=1 // pred_region
      %s31 = sadd.s32 0, 0
      %p32 = scmp.lt.s32.totalorder %s31, 0
      %s33 = scalar_select %p32, %s31, 0
      %s34 = smul.u32 2, %s33
      %36 = vsyncadd [#allocation7], 0
      %s37 = smul.addr %s34, 8
      %s38 = scalar_lea.hbm %s1, %s37
      %s39 = sshll.u32 %s38, 4
      %s40 = int_to_ptr.hbm [resolvable:$true] %s39
      %s41 = sshll.u32 [#allocation6], 4
      %s42 = int_to_ptr.vmem [resolvable:$true] %s41
      %47 = dma.hbm_to_vmem [thread:$0]  %s40, 256, %s42, [#allocation7], 128, 128, 8
    $region9: #{tpu_custom_call.1} parent=1 // pred_fallthru
      _
    // Predicated region
    $region10: #{tpu_custom_call.1} parent=1 // pred_check
      _
    $region11: #{tpu_custom_call.1} parent=1 // pred_check_branch
      %49 = sbr.rel (0) target = $region13
    $region12: #{tpu_custom_call.1} parent=1 // pred_region
      %51 = dma.done [#allocation4], 256
    $region13: #{tpu_custom_call.1} parent=1 // pred_fallthru
      _
    // Predicated region
    $region14: #{tpu_custom_call.1} parent=1 // pred_check
      _
    $region15: #{tpu_custom_call.1} parent=1 // pred_check_branch
      %53 = sbr.rel (0) target = $region17
    $region16: #{tpu_custom_call.1} parent=1 // pred_region
      %55 = dma.done [#allocation7], 256
    $region17: #{tpu_custom_call.1} parent=1 // pred_fallthru
      _
    %s56 = sadd.s32 0, 0
    %p57 = scmp.lt.s32.totalorder %s56, 0
    %s58 = scalar_select %p57, %s56, 0
    %s59 = smul.u32 2, %s58
    %s60 = sadd.s32 0, 0
    %p61 = scmp.lt.s32.totalorder %s60, 0
    %s62 = scalar_select %p61, %s60, 0
    %s63 = smul.u32 2, %s62
    %p64 = scmp.eq.s32.totalorder 0, 0
    // Predicated region
    $region18: #{tpu_custom_call.1} parent=1 // pred_check
      %p65 = pneg %p64
    $region19: #{tpu_custom_call.1} parent=1 // pred_check_branch
      %67 = sbr.rel (%p65) target = $region21
    $region20: #{tpu_custom_call.1} parent=1 // pred_region
      %68 = vst [vmem:[#allocation2] sm:$0xff] 0.0
    $region21: #{tpu_custom_call.1} parent=1 // pred_fallthru
      _
    %v69 = vld [vmem:[#allocation2] sm:$0xff]
    %v70 = vld [vmem:[#allocation3] sm:$0xff]
    %v71 = vld [vmem:[#allocation3 + $0x8] sm:$0xff]
    %v72 = vld [vmem:[#allocation6] sm:$0xff]
    %v73 = vld [vmem:[#allocation6 + $0x8] sm:$0xff]
    %v74 = vsub.f32 %v70, %v72
    %v75 = vsub.f32 %v71, %v73
    %v76 = vmul.f32 %v74, %v74
    %v77 = vmul.f32 %v75, %v75
    %v78 = vadd.f32 %v76, %v77
    %v79 = vadd.f32 %v69, %v78
    %80 = vst [vmem:[#allocation2] sm:$0xff] %v79
    // Predicated region
    $region22: #{tpu_custom_call.1} parent=1 // pred_check
      %p81 = pneg %p64
    $region23: #{tpu_custom_call.1} parent=1 // pred_check_branch
      %83 = sbr.rel (%p81) target = $region25
    $region24: #{tpu_custom_call.1} parent=1 // pred_region
      %v84 = vld [vmem:[#allocation2] sm:$0xff]
      %85 = vadd.xlane.f32.xlu0 %v84
      %v86 = vpop.xlane.xlu0 %85
      %v87 = vrot.slane %v86, 4
      %v88 = vadd.f32 %v86, %v87
      %v89 = vrot.slane %v88, 2
      %v90 = vadd.f32 %v88, %v89
      %v91 = vrot.slane %v90, 1
      %v92 = vadd.f32 %v90, %v91
      %s93 = vtos %v92
      %s94 = scalar_lea.smem [#allocation8], 0
      %95 = sst [smem:[%s94]] %s93
    $region25: #{tpu_custom_call.1} parent=1 // pred_fallthru
      _
    // Predicated region
    $region26: #{tpu_custom_call.1} parent=1 // pred_check
      _
    $region27: #{tpu_custom_call.1} parent=1 // pred_check_branch
      %97 = sbr.rel (0) target = $region29
    $region28: #{tpu_custom_call.1} parent=1 // pred_region
      %99 = vsyncadd [#allocation5], 0
      %s101 = sshll.u32 %s2, 4
      %s102 = int_to_ptr.hbm [resolvable:$true] %s101
      %104 = dma.smem_to_hbm [#allocation8], 16, %s102, [#allocation5]
    $region29: #{tpu_custom_call.1} parent=1 // pred_fallthru
      _
    // Predicated region
    $region30: #{tpu_custom_call.1} parent=1 // pred_check
      _
    $region31: #{tpu_custom_call.1} parent=1 // pred_check_branch
      %106 = sbr.rel (0) target = $region33
    $region32: #{tpu_custom_call.1} parent=1 // pred_region
      %108 = dma.done [#allocation5], 16
    $region33: #{tpu_custom_call.1} parent=1 // pred_fallthru
      _
    %109 = sfence
    %110 = vsyncpa [#allocation4], 1
    %111 = vsyncpa [#allocation7], 1
    %112 = vsyncpa [#allocation5], 1

</llo_original>
